<compile_context>
chip_gen: v5e
topology: v5e:2x2
jax: 0.10.0
libtpu: 0.0.40
codegen_flags: <defaults>
</compile_context>

<pallas_src>
import functools

import jax
import jax.numpy as jnp
from jax import lax
from jax.experimental import pallas as pl
from jax.experimental.pallas import tpu as pltpu


def _embed_onehot_kernel(ids_ref, table_ref, out_ref, *, rows_per_lane):
    # ids_ref:   (1, G, R) int32; member j of each group is pre-shifted by
    #            j*vocab so it selects the j-th diagonal block of the table.
    # table_ref: (R*vocab, R*dim) packed block-diagonal table, VMEM-resident
    #            (grid-invariant BlockSpec).
    # out_ref:   (G, R*dim) lane-dense output slab (R*dim multiple of 128
    #            whenever dim divides 128).
    ids = ids_ref[0]                                   # (G, R)
    g = ids.shape[0]
    rv = table_ref.shape[0]                            # R * vocab
    col = lax.broadcasted_iota(jnp.int32, (g, rv), 1)  # column ids, VPU-cheap
    onehot = jnp.zeros((g, rv), dtype=jnp.float32)
    for j in range(rows_per_lane):                     # static tiny loop (R)
        onehot = onehot + (col == ids[:, j:j + 1]).astype(jnp.float32)
    # One MXU matmul per block replaces G*R tiny row DMAs. HIGHEST precision
    # keeps the 1.0 * table[v, d] products exact (a true gather).
    out_ref[...] = jnp.dot(
        onehot,
        table_ref[...].astype(jnp.float32),
        preferred_element_type=jnp.float32,
        precision=lax.Precision.HIGHEST,
    ).astype(out_ref.dtype)


def embedding_lookup(ms, table, *, block_ids=256):
    """Pallas equivalent of nn.Embedding(table)(ms)."""
    orig_shape = ms.shape
    vocab, dim = table.shape

    ids = ms.reshape(-1).astype(jnp.int32)
    # TODO(synk): nn.Embedding raises IndexError on out-of-range ids; a kernel
    # cannot raise, so we clamp instead (also guarantees in-bounds access).
    ids = jnp.clip(ids, 0, vocab - 1)
    n = int(ids.shape[0])

    # Pack R consecutive embedding rows per 128-lane output row when possible,
    # making every output store lane-dense / unmasked.
    r = 128 // dim if (dim <= 128 and 128 % dim == 0) else 1

    tb = max(r, (block_ids // r) * r)        # ids per grid step (multiple of R)
    tb = min(tb, -(-n // r) * r)             # don't over-block tiny inputs
    n_pad = -(-n // tb) * tb
    n_blocks = n_pad // tb
    g = tb // r                              # output rows per grid step

    # Shift member j of each group by j*vocab -> selects diagonal block j.
    ids_p = jnp.pad(ids, (0, n_pad - n)).reshape(n_blocks, g, r)
    shift = jnp.arange(r, dtype=jnp.int32) * vocab
    ids_shifted = ids_p + shift

    # Block-diagonal packed table: packed[j*vocab+v, j*dim+d] = table[v, d].
    if r == 1:
        packed = table
    else:
        eye = jnp.eye(r, dtype=table.dtype)
        packed = jnp.einsum("vd,jk->jvkd", table, eye).reshape(r * vocab, r * dim)

    kernel = functools.partial(_embed_onehot_kernel, rows_per_lane=r)

    out = pl.pallas_call(
        kernel,
        grid_spec=pltpu.PrefetchScalarGridSpec(
            num_scalar_prefetch=0,
            grid=(n_blocks,),
            in_specs=[
                # One block of (pre-shifted) ids per grid step.
                pl.BlockSpec((1, g, r), lambda i: (i, 0, 0)),
                # Grid-invariant index_map: packed table resident in VMEM.
                pl.BlockSpec((r * vocab, r * dim), lambda i: (0, 0)),
            ],
            out_specs=pl.BlockSpec((g, r * dim), lambda i: (i, 0)),
        ),
        out_shape=jax.ShapeDtypeStruct((n_pad // r, r * dim), table.dtype),
        compiler_params=pltpu.CompilerParams(
            # Independent row blocks -> shard across both TCs on v7x.
            dimension_semantics=("parallel",),
        ),
    )(ids_shifted, packed)

    # (n_pad // r, r*dim) is row-major-contiguous with (n_pad, dim).
    out = out.reshape(n_pad, dim)[:n]
    return out.reshape(orig_shape + (dim,))


class ModelEmbedder:
    """JAX/Pallas port of model_embedder(config)."""

    def __init__(self, config, key):
        vocab = config["model_zoo_size"] + 1
        dim = config["embedding_dim"]
        # nn.Embedding default init: N(0, 1).
        self.weight = jax.random.normal(key, (vocab, dim), dtype=jnp.float32)

    def __call__(self, ms):
        return embedding_lookup(ms, self.weight)


if __name__ == "__main__":
    config = {"model_zoo_size": 15, "embedding_dim": 32}

    key = jax.random.PRNGKey(0)
    k_w, k_ids = jax.random.split(key)

    embedder = ModelEmbedder(config, k_w)

    # Small example: batch of 2 sequences of 8 model ids each.
    ms = jax.random.randint(
        k_ids, (2, 8), minval=0, maxval=config["model_zoo_size"] + 1,
        dtype=jnp.int32,
    )

    out = embedder(ms)
    out = jax.block_until_ready(out)

    # Correctness check against the plain-JAX reference (table[ms]).
    ref = embedder.weight[ms]
    assert out.shape == (2, 8, config["embedding_dim"])
    assert jnp.allclose(out, ref, rtol=1e-5, atol=1e-5), (
        "mismatch vs reference embedding lookup"
    )

    print("KERNEL_OK")
</pallas_src>

<mosaic_0001>
module attributes {stable_mosaic.version = 11 : i64} {
  func.func @_embed_onehot_kernel(%arg0: i32, %arg1: memref<1x4x4xi32, #tpu.memory_space<vmem>>, %arg2: memref<64x128xf32, #tpu.memory_space<vmem>>, %arg3: memref<4x128xf32, #tpu.memory_space<vmem>>) attributes {dimension_semantics = [#tpu.dimension_semantics<parallel>], iteration_bounds = array<i64: 1>, scalar_prefetch = 0 : i64, scratch_operands = 0 : i64, tpu.core_type = #tpu.core_type<tc>, window_params = [{transform_indices = @transform_0, window_bounds = array<i64: 1, 4, 4>}, {pipeline_mode = #tpu.pipeline_mode<synchronous>, transform_indices = @transform_1, window_bounds = array<i64: 64, 128>}, {transform_indices = @transform_2, window_bounds = array<i64: 4, 128>}]} {
    %c0 = arith.constant 0 : index
    %c0_0 = arith.constant 0 : index
    %c0_1 = arith.constant 0 : index
    %0 = vector.load %arg1[%c0, %c0_0, %c0_1] : memref<1x4x4xi32, #tpu.memory_space<vmem>>, vector<1x4x4xi32>
    %1 = vector.shape_cast %0 : vector<1x4x4xi32> to vector<4x4xi32>
    %2 = tpu.iota {dimensions = array<i32: 1>} : vector<4x64xi32>
    %cst = arith.constant 0.000000e+00 : f32
    %3 = vector.broadcast %cst : f32 to vector<4x64xf32>
    %4 = vector.extract_strided_slice %1 {offsets = [0, 0], sizes = [4, 1], strides = [1, 1]} : vector<4x4xi32> to vector<4x1xi32>
    %5 = vector.broadcast %4 : vector<4x1xi32> to vector<4x64xi32>
    %6 = arith.cmpi eq, %2, %5 : vector<4x64xi32>
    %7 = arith.extui %6 : vector<4x64xi1> to vector<4x64xi32>
    %8 = arith.sitofp %7 : vector<4x64xi32> to vector<4x64xf32>
    %9 = arith.addf %3, %8 : vector<4x64xf32>
    %10 = vector.extract_strided_slice %1 {offsets = [0, 1], sizes = [4, 1], strides = [1, 1]} : vector<4x4xi32> to vector<4x1xi32>
    %11 = vector.broadcast %10 : vector<4x1xi32> to vector<4x64xi32>
    %12 = arith.cmpi eq, %2, %11 : vector<4x64xi32>
    %13 = arith.extui %12 : vector<4x64xi1> to vector<4x64xi32>
    %14 = arith.sitofp %13 : vector<4x64xi32> to vector<4x64xf32>
    %15 = arith.addf %9, %14 : vector<4x64xf32>
    %16 = vector.extract_strided_slice %1 {offsets = [0, 2], sizes = [4, 1], strides = [1, 1]} : vector<4x4xi32> to vector<4x1xi32>
    %17 = vector.broadcast %16 : vector<4x1xi32> to vector<4x64xi32>
    %18 = arith.cmpi eq, %2, %17 : vector<4x64xi32>
    %19 = arith.extui %18 : vector<4x64xi1> to vector<4x64xi32>
    %20 = arith.sitofp %19 : vector<4x64xi32> to vector<4x64xf32>
    %21 = arith.addf %15, %20 : vector<4x64xf32>
    %22 = vector.extract_strided_slice %1 {offsets = [0, 3], sizes = [4, 1], strides = [1, 1]} : vector<4x4xi32> to vector<4x1xi32>
    %23 = vector.broadcast %22 : vector<4x1xi32> to vector<4x64xi32>
    %24 = arith.cmpi eq, %2, %23 : vector<4x64xi32>
    %25 = arith.extui %24 : vector<4x64xi1> to vector<4x64xi32>
    %26 = arith.sitofp %25 : vector<4x64xi32> to vector<4x64xf32>
    %27 = arith.addf %21, %26 : vector<4x64xf32>
    %c0_2 = arith.constant 0 : index
    %c0_3 = arith.constant 0 : index
    %28 = vector.load %arg2[%c0_2, %c0_3] : memref<64x128xf32, #tpu.memory_space<vmem>>, vector<64x128xf32>
    %cst_4 = arith.constant dense<0.000000e+00> : vector<4x128xf32>
    %29 = tpu.matmul %27, %28, %cst_4 {dimension_numbers = #tpu.dot_dimension_numbers<[1], [0], [0], [1], [0, 0, 1, 1], [], []>, precision = #tpu.contract_precision<fp32>} : vector<4x64xf32>, vector<64x128xf32>, vector<4x128xf32> -> vector<4x128xf32>
    %c0_5 = arith.constant 0 : index
    %c0_6 = arith.constant 0 : index
    %30 = vector.load %arg3[%c0_5, %c0_6] : memref<4x128xf32, #tpu.memory_space<vmem>>, vector<4x128xf32>
    tpu.vector_store %arg3[%c0_5, %c0_6], %29 {strides = array<i32>} : memref<4x128xf32, #tpu.memory_space<vmem>>, vector<4x128xf32>,
    return
  }
  func.func @transform_0(%arg0: i32) -> (i32, i32, i32) {
    %c0_i32 = arith.constant 0 : i32
    %c0_i32_0 = arith.constant 0 : i32
    %c0_i32_1 = arith.constant 0 : i32
    return %arg0, %c0_i32, %c0_i32_0 : i32, i32, i32
  }
  func.func @transform_1(%arg0: i32) -> (i32, i32) {
    %c0_i32 = arith.constant 0 : i32
    %c0_i32_0 = arith.constant 0 : i32
    %c0_i32_1 = arith.constant 0 : i32
    return %c0_i32, %c0_i32_0 : i32, i32
  }
  func.func @transform_2(%arg0: i32) -> (i32, i32) {
    %c0_i32 = arith.constant 0 : i32
    %c0_i32_0 = arith.constant 0 : i32
    return %arg0, %c0_i32 : i32, i32
  }
}

</mosaic_0001>

<llo_original>
// kernel: tpu_custom_call.1
$region0: #{tpu_custom_call.1}
  #allocation0 [shape = 'u32[]', space=smem, size = 0x4, offset = 0x4, fixed_abs, tag = 'smem constant byte address 0x4 - core index']
  #allocation1 [shape = 'u32[72,128]{1,0:T(1,128)}', space=vmem, size = 0x9000, scoped, tag = 'internal scratch']
  %s0 = inlined_call_operand.hbm [shape: s32[1,4,4], index: 0, kind: input, shape index: {}]
  %s1 = inlined_call_operand.hbm [shape: f32[64,128], index: 1, kind: input, shape index: {}]
  %s2 = inlined_call_operand.hbm [shape: f32[4,128], index: 2, kind: output, shape index: {}]
  %s3 = sld [smem:[#allocation0]]
  $region26: #{tpu_custom_call.1} parent=0
    _
  %s5 = ssub.s32 1, %s3
  %s6 = scalar_select 0, %s5, %s3
  $region1: #{tpu_custom_call.1} parent=0
    #allocation2 [shape = 'u8[2048]{0}', space=vmem, size = 0x800, scoped, tag = 'input window, operand 0, single buffered']
    #allocation3 [shape = 's32[1]{0}', space=sflag, size = 0x4, scoped, tag = 'scoped memory for tpu_custom_call.1']
    #allocation4 [shape = 's32[1]{0}', space=sflag, size = 0x4, scoped, tag = 'scoped memory for tpu_custom_call.1']
    #allocation5 [shape = 'u8[32768]{0}', space=vmem, size = 0x8000, scoped, tag = 'input window, operand 1, single buffered']
    #allocation6 [shape = 's32[1]{0}', space=sflag, size = 0x4, scoped, tag = 'scoped memory for tpu_custom_call.1']
    #allocation7 [shape = 'u8[2048]{0}', space=vmem, size = 0x800, scoped, tag = 'output window, operand 0, single buffered']
    %7 = vsyncpa [#allocation3], 0
    %8 = vsyncpa [#allocation6], 0
    %9 = vsyncpa [#allocation4], 0
    // Predicated region
    $region2: #{tpu_custom_call.1} parent=1 // pred_check
      _
    $region3: #{tpu_custom_call.1} parent=1 // pred_check_branch
      %11 = sbr.rel (0) target = $region5
    $region4: #{tpu_custom_call.1} parent=1 // pred_region
      %13 = vsyncadd [#allocation3], 0
      %s15 = sshll.u32 %s0, 4
      %s16 = int_to_ptr.hbm [resolvable:$true] %s15
      %s17 = sshll.u32 [#allocation2], 4
      %s18 = int_to_ptr.vmem [resolvable:$true] %s17
      %20 = dma.hbm_to_vmem [thread:$0]  %s16, 64, %s18, [#allocation3]
    $region5: #{tpu_custom_call.1} parent=1 // pred_fallthru
      _
    // Predicated region
    $region6: #{tpu_custom_call.1} parent=1 // pred_check
      _
    $region7: #{tpu_custom_call.1} parent=1 // pred_check_branch
      %22 = sbr.rel (0) target = $region9
    $region8: #{tpu_custom_call.1} parent=1 // pred_region
      %24 = vsyncadd [#allocation6], 0
      %s25 = sshll.u32 %s1, 4
      %s26 = int_to_ptr.hbm [resolvable:$true] %s25
      %s27 = sshll.u32 [#allocation5], 4
      %s28 = int_to_ptr.vmem [resolvable:$true] %s27
      %33 = dma.hbm_to_vmem [thread:$0]  %s26, 1024, %s28, [#allocation6], 128, 128, 8
    $region9: #{tpu_custom_call.1} parent=1 // pred_fallthru
      _
    // Predicated region
    $region10: #{tpu_custom_call.1} parent=1 // pred_check
      _
    $region11: #{tpu_custom_call.1} parent=1 // pred_check_branch
      %35 = sbr.rel (0) target = $region13
    $region12: #{tpu_custom_call.1} parent=1 // pred_region
      %37 = dma.done [#allocation3], 64
    $region13: #{tpu_custom_call.1} parent=1 // pred_fallthru
      _
    // Predicated region
    $region14: #{tpu_custom_call.1} parent=1 // pred_check
      _
    $region15: #{tpu_custom_call.1} parent=1 // pred_check_branch
      %39 = sbr.rel (0) target = $region17
    $region16: #{tpu_custom_call.1} parent=1 // pred_region
      %41 = dma.done [#allocation6], 1024
    $region17: #{tpu_custom_call.1} parent=1 // pred_fallthru
      _
    %v42 = vld [vmem:[#allocation2] sm:$0xf]
    %v43 = vlaneseq
    %v44 = vand.u32 %v43, 127
    %45 = vset.pattern.permute.xlu0 0
    %46 = vperm.xlu0 %45, %v42
    %v47 = vpop.permute.xlu0 %46
    %vm48 = vcmp.eq.s32.totalorder %v44, %v47
    %v49 = vsel %vm48, 1, 0
    %v50 = vcvt.s32.f32 %v49
    %v51 = vadd.f32 %v50, 0.0
    %52 = vset.pattern.permute.xlu0 1
    %53 = vperm.xlu0 %52, %v42
    %v54 = vpop.permute.xlu0 %53
    %vm55 = vcmp.eq.s32.totalorder %v44, %v54
    %v56 = vsel %vm55, 1, 0
    %v57 = vcvt.s32.f32 %v56
    %v58 = vadd.f32 %v51, %v57
    %59 = vset.pattern.permute.xlu0 2
    %60 = vperm.xlu0 %59, %v42
    %v61 = vpop.permute.xlu0 %60
    %vm62 = vcmp.eq.s32.totalorder %v44, %v61
    %v63 = vsel %vm62, 1, 0
    %v64 = vcvt.s32.f32 %v63
    %v65 = vadd.f32 %v58, %v64
    %66 = vset.pattern.permute.xlu0 3
    %67 = vperm.xlu0 %66, %v42
    %v68 = vpop.permute.xlu0 %67
    %vm69 = vcmp.eq.s32.totalorder %v44, %v68
    %v70 = vsel %vm69, 1, 0
    %v71 = vcvt.s32.f32 %v70
    %v72 = vadd.f32 %v65, %v71
    %v73 = vld [vmem:[#allocation5] sm:$0xff]
    %v74 = vld [vmem:[#allocation5 + $0x8] sm:$0xff]
    %v75 = vld [vmem:[#allocation5 + $0x10] sm:$0xff]
    %v76 = vld [vmem:[#allocation5 + $0x18] sm:$0xff]
    %v77 = vld [vmem:[#allocation5 + $0x20] sm:$0xff]
    %v78 = vld [vmem:[#allocation5 + $0x28] sm:$0xff]
    %v79 = vld [vmem:[#allocation5 + $0x30] sm:$0xff]
    %v80 = vld [vmem:[#allocation5 + $0x38] sm:$0xff]
    %vm81 = vcmask 523264
    %v83 = vsel %vm81, %v72, 0
    %85 = vmatpush.msra.mxu0 0.0
    %86 = vmatpush.msra.mxu0 0.0
    %87 = vmatpush.msra.mxu0 0.0
    %88 = vmatpush.msra.mxu0 0.0
    %89 = vmatpush.msra.mxu0 0.0
    %90 = vmatpush.msra.mxu0 0.0
    %91 = vmatpush.msra.mxu0 0.0
    %92 = vmatpush.msra.mxu0 0.0
    %v93 = vand.u32 %v80, 4294901760
    %94 = vmatpush.msra.mxu0 %v93
    %v95 = vand.u32 %v79, 4294901760
    %96 = vmatpush.msra.mxu0 %v95
    %v97 = vand.u32 %v78, 4294901760
    %98 = vmatpush.msra.mxu0 %v97
    %v99 = vand.u32 %v77, 4294901760
    %100 = vmatpush.msra.mxu0 %v99
    %v101 = vand.u32 %v76, 4294901760
    %102 = vmatpush.msra.mxu0 %v101
    %v103 = vand.u32 %v75, 4294901760
    %104 = vmatpush.msra.mxu0 %v103
    %v105 = vand.u32 %v74, 4294901760
    %106 = vmatpush.msra.mxu0 %v105
    %v107 = vand.u32 %v73, 4294901760
    %108 = vmatpush.msra.mxu0 %v107
    %v109 = vand.u32 %v83, 4294901760
    %v110 = vsub.f32 %v83, %v109
    %v111 = vand.u32 %v110, 4294901760
    %v112 = vsub.f32 %v110, %v111
    %v113 = vand.u32 %v112, 4294901760
    %114 = vmatmul.f32.gmra.mxu0 %v113
    %v115 = vpop.f32.mrf.mxu0
    %v116 = vadd.f32 0.0, %v115
    %117 = vdwg.mxu0
    %118 = vmatpush.msra.mxu0 0.0
    %119 = vmatpush.msra.mxu0 0.0
    %120 = vmatpush.msra.mxu0 0.0
    %121 = vmatpush.msra.mxu0 0.0
    %122 = vmatpush.msra.mxu0 0.0
    %123 = vmatpush.msra.mxu0 0.0
    %124 = vmatpush.msra.mxu0 0.0
    %125 = vmatpush.msra.mxu0 0.0
    %v126 = vand.u32 %v80, 4294901760
    %v127 = vsub.f32 %v80, %v126
    %v128 = vand.u32 %v127, 4294901760
    %v129 = vsub.f32 %v127, %v128
    %v130 = vand.u32 %v129, 4294901760
    %131 = vmatpush.msra.mxu0 %v130
    %v132 = vand.u32 %v79, 4294901760
    %v133 = vsub.f32 %v79, %v132
    %v134 = vand.u32 %v133, 4294901760
    %v135 = vsub.f32 %v133, %v134
    %v136 = vand.u32 %v135, 4294901760
    %137 = vmatpush.msra.mxu0 %v136
    %v138 = vand.u32 %v78, 4294901760
    %v139 = vsub.f32 %v78, %v138
    %v140 = vand.u32 %v139, 4294901760
    %v141 = vsub.f32 %v139, %v140
    %v142 = vand.u32 %v141, 4294901760
    %143 = vmatpush.msra.mxu0 %v142
    %v144 = vand.u32 %v77, 4294901760
    %v145 = vsub.f32 %v77, %v144
    %v146 = vand.u32 %v145, 4294901760
    %v147 = vsub.f32 %v145, %v146
    %v148 = vand.u32 %v147, 4294901760
    %149 = vmatpush.msra.mxu0 %v148
    %v150 = vand.u32 %v76, 4294901760
    %v151 = vsub.f32 %v76, %v150
    %v152 = vand.u32 %v151, 4294901760
    %v153 = vsub.f32 %v151, %v152
    %v154 = vand.u32 %v153, 4294901760
    %155 = vmatpush.msra.mxu0 %v154
    %v156 = vand.u32 %v75, 4294901760
    %v157 = vsub.f32 %v75, %v156
    %v158 = vand.u32 %v157, 4294901760
    %v159 = vsub.f32 %v157, %v158
    %v160 = vand.u32 %v159, 4294901760
    %161 = vmatpush.msra.mxu0 %v160
    %v162 = vand.u32 %v74, 4294901760
    %v163 = vsub.f32 %v74, %v162
    %v164 = vand.u32 %v163, 4294901760
    %v165 = vsub.f32 %v163, %v164
    %v166 = vand.u32 %v165, 4294901760
    %167 = vmatpush.msra.mxu0 %v166
    %v168 = vand.u32 %v73, 4294901760
    %v169 = vsub.f32 %v73, %v168
    %v170 = vand.u32 %v169, 4294901760
    %v171 = vsub.f32 %v169, %v170
    %v172 = vand.u32 %v171, 4294901760
    %173 = vmatpush.msra.mxu0 %v172
    %v174 = vand.u32 %v83, 4294901760
    %175 = vmatmul.f32.gmra.mxu0 %v174
    %v176 = vpop.f32.mrf.mxu0
    %v177 = vadd.f32 %v116, %v176
    %178 = vdwg.mxu0
    %179 = vmatpush.msra.mxu0 0.0
    %180 = vmatpush.msra.mxu0 0.0
    %181 = vmatpush.msra.mxu0 0.0
    %182 = vmatpush.msra.mxu0 0.0
    %183 = vmatpush.msra.mxu0 0.0
    %184 = vmatpush.msra.mxu0 0.0
    %185 = vmatpush.msra.mxu0 0.0
    %186 = vmatpush.msra.mxu0 0.0
    %v187 = vand.u32 %v80, 4294901760
    %v188 = vsub.f32 %v80, %v187
    %189 = vmatpush.msra.mxu0 %v188
    %v190 = vand.u32 %v79, 4294901760
    %v191 = vsub.f32 %v79, %v190
    %192 = vmatpush.msra.mxu0 %v191
    %v193 = vand.u32 %v78, 4294901760
    %v194 = vsub.f32 %v78, %v193
    %195 = vmatpush.msra.mxu0 %v194
    %v196 = vand.u32 %v77, 4294901760
    %v197 = vsub.f32 %v77, %v196
    %198 = vmatpush.msra.mxu0 %v197
    %v199 = vand.u32 %v76, 4294901760
    %v200 = vsub.f32 %v76, %v199
    %201 = vmatpush.msra.mxu0 %v200
    %v202 = vand.u32 %v75, 4294901760
    %v203 = vsub.f32 %v75, %v202
    %204 = vmatpush.msra.mxu0 %v203
    %v205 = vand.u32 %v74, 4294901760
    %v206 = vsub.f32 %v74, %v205
    %207 = vmatpush.msra.mxu0 %v206
    %v208 = vand.u32 %v73, 4294901760
    %v209 = vsub.f32 %v73, %v208
    %210 = vmatpush.msra.mxu0 %v209
    %v211 = vand.u32 %v83, 4294901760
    %v212 = vsub.f32 %v83, %v211
    %213 = vmatmul.f32.gmra.mxu0 %v212
    %v214 = vpop.f32.mrf.mxu0
    %v215 = vadd.f32 %v177, %v214
    %216 = vdwg.mxu0
    %217 = vmatpush.msra.mxu0 0.0
    %218 = vmatpush.msra.mxu0 0.0
    %219 = vmatpush.msra.mxu0 0.0
    %220 = vmatpush.msra.mxu0 0.0
    %221 = vmatpush.msra.mxu0 0.0
    %222 = vmatpush.msra.mxu0 0.0
    %223 = vmatpush.msra.mxu0 0.0
    %224 = vmatpush.msra.mxu0 0.0
    %v225 = vand.u32 %v80, 4294901760
    %226 = vmatpush.msra.mxu0 %v225
    %v227 = vand.u32 %v79, 4294901760
    %228 = vmatpush.msra.mxu0 %v227
    %v229 = vand.u32 %v78, 4294901760
    %230 = vmatpush.msra.mxu0 %v229
    %v231 = vand.u32 %v77, 4294901760
    %232 = vmatpush.msra.mxu0 %v231
    %v233 = vand.u32 %v76, 4294901760
    %234 = vmatpush.msra.mxu0 %v233
    %v235 = vand.u32 %v75, 4294901760
    %236 = vmatpush.msra.mxu0 %v235
    %v237 = vand.u32 %v74, 4294901760
    %238 = vmatpush.msra.mxu0 %v237
    %v239 = vand.u32 %v73, 4294901760
    %240 = vmatpush.msra.mxu0 %v239
    %v241 = vand.u32 %v83, 4294901760
    %v242 = vsub.f32 %v83, %v241
    %v243 = vand.u32 %v242, 4294901760
    %244 = vmatmul.f32.gmra.mxu0 %v243
    %v245 = vpop.f32.mrf.mxu0
    %v246 = vadd.f32 %v215, %v245
    %247 = vdwg.mxu0
    %248 = vmatpush.msra.mxu0 0.0
    %249 = vmatpush.msra.mxu0 0.0
    %250 = vmatpush.msra.mxu0 0.0
    %251 = vmatpush.msra.mxu0 0.0
    %252 = vmatpush.msra.mxu0 0.0
    %253 = vmatpush.msra.mxu0 0.0
    %254 = vmatpush.msra.mxu0 0.0
    %255 = vmatpush.msra.mxu0 0.0
    %v256 = vand.u32 %v80, 4294901760
    %v257 = vsub.f32 %v80, %v256
    %v258 = vand.u32 %v257, 4294901760
    %259 = vmatpush.msra.mxu0 %v258
    %v260 = vand.u32 %v79, 4294901760
    %v261 = vsub.f32 %v79, %v260
    %v262 = vand.u32 %v261, 4294901760
    %263 = vmatpush.msra.mxu0 %v262
    %v264 = vand.u32 %v78, 4294901760
    %v265 = vsub.f32 %v78, %v264
    %v266 = vand.u32 %v265, 4294901760
    %267 = vmatpush.msra.mxu0 %v266
    %v268 = vand.u32 %v77, 4294901760
    %v269 = vsub.f32 %v77, %v268
    %v270 = vand.u32 %v269, 4294901760
    %271 = vmatpush.msra.mxu0 %v270
    %v272 = vand.u32 %v76, 4294901760
    %v273 = vsub.f32 %v76, %v272
    %v274 = vand.u32 %v273, 4294901760
    %275 = vmatpush.msra.mxu0 %v274
    %v276 = vand.u32 %v75, 4294901760
    %v277 = vsub.f32 %v75, %v276
    %v278 = vand.u32 %v277, 4294901760
    %279 = vmatpush.msra.mxu0 %v278
    %v280 = vand.u32 %v74, 4294901760
    %v281 = vsub.f32 %v74, %v280
    %v282 = vand.u32 %v281, 4294901760
    %283 = vmatpush.msra.mxu0 %v282
    %v284 = vand.u32 %v73, 4294901760
    %v285 = vsub.f32 %v73, %v284
    %v286 = vand.u32 %v285, 4294901760
    %287 = vmatpush.msra.mxu0 %v286
    %v288 = vand.u32 %v83, 4294901760
    %289 = vmatmul.f32.gmra.mxu0 %v288
    %v290 = vpop.f32.mrf.mxu0
    %v291 = vadd.f32 %v246, %v290
    %292 = vdwg.mxu0
    %293 = vmatpush.msra.mxu0 0.0
    %294 = vmatpush.msra.mxu0 0.0
    %295 = vmatpush.msra.mxu0 0.0
    %296 = vmatpush.msra.mxu0 0.0
    %297 = vmatpush.msra.mxu0 0.0
    %298 = vmatpush.msra.mxu0 0.0
    %299 = vmatpush.msra.mxu0 0.0
    %300 = vmatpush.msra.mxu0 0.0
    %v301 = vand.u32 %v80, 4294901760
    %302 = vmatpush.msra.mxu0 %v301
    %v303 = vand.u32 %v79, 4294901760
    %304 = vmatpush.msra.mxu0 %v303
    %v305 = vand.u32 %v78, 4294901760
    %306 = vmatpush.msra.mxu0 %v305
    %v307 = vand.u32 %v77, 4294901760
    %308 = vmatpush.msra.mxu0 %v307
    %v309 = vand.u32 %v76, 4294901760
    %310 = vmatpush.msra.mxu0 %v309
    %v311 = vand.u32 %v75, 4294901760
    %312 = vmatpush.msra.mxu0 %v311
    %v313 = vand.u32 %v74, 4294901760
    %314 = vmatpush.msra.mxu0 %v313
    %v315 = vand.u32 %v73, 4294901760
    %316 = vmatpush.msra.mxu0 %v315
    %v317 = vand.u32 %v83, 4294901760
    %318 = vmatmul.f32.gmra.mxu0 %v317
    %v319 = vpop.f32.mrf.mxu0
    %v320 = vadd.f32 %v291, %v319
    %321 = vdwg.mxu0
    %322 = vst [vmem:[#allocation7] sm:$0xf] %v320
    // Predicated region
    $region18: #{tpu_custom_call.1} parent=1 // pred_check
      _
    $region19: #{tpu_custom_call.1} parent=1 // pred_check_branch
      %324 = sbr.rel (0) target = $region21
    $region20: #{tpu_custom_call.1} parent=1 // pred_region
      %326 = vsyncadd [#allocation4], 0
      %s328 = sshll.u32 [#allocation7], 4
      %s329 = int_to_ptr.vmem [resolvable:$true] %s328
      %s330 = sshll.u32 %s2, 4
      %s331 = int_to_ptr.hbm [resolvable:$true] %s330
      %333 = dma.vmem_to_hbm [thread:$0]  %s329, 64, %s331, [#allocation4]
    $region21: #{tpu_custom_call.1} parent=1 // pred_fallthru
      _
    // Predicated region
    $region22: #{tpu_custom_call.1} parent=1 // pred_check
      _
    $region23: #{tpu_custom_call.1} parent=1 // pred_check_branch
      %335 = sbr.rel (0) target = $region25
    $region24: #{tpu_custom_call.1} parent=1 // pred_region
      %337 = dma.done [#allocation4], 64
    $region25: #{tpu_custom_call.1} parent=1 // pred_fallthru
      _
    %338 = vsyncpa [#allocation3], 1
    %339 = vsyncpa [#allocation6], 1
    %340 = vsyncpa [#allocation4], 1

</llo_original>
